<compile_context>
chip_gen: v6e
topology: v6e:2x2x1
jax: 0.10.0
libtpu: 0.0.40
codegen_flags: <defaults>
</compile_context>

<pallas_src>
import math
from typing import List

import jax
import jax.numpy as jnp
from jax.experimental import pallas as pl
from jax.experimental.pallas import tpu as pltpu


# ----------------------------------------------------------------------------
# Fused forward kernel (built per architecture; all sizes are Python ints)
# ----------------------------------------------------------------------------
def _make_cvae_kernel(num_cats: int, n_hidden: int, latent_dim: int):
    def dot(a, b):
        return jnp.dot(a, b, preferred_element_type=jnp.float32)

    def kernel(*refs):
        r = list(refs)

        # ---- unpack inputs (same order as the `inputs` list in cvae_forward)
        y_ref = r.pop(0)
        cat_refs = [r.pop(0) for _ in range(num_cats)]
        eps_ref = r.pop(0)

        enc_first_w = [r.pop(0) for _ in range(1 + num_cats)]   # [W_y, W_c0,...]
        enc_first_b = r.pop(0)
        enc_rest = [(r.pop(0), r.pop(0)) for _ in range(n_hidden - 1)]
        mv_w = r.pop(0)
        mv_b = r.pop(0)
        dec_first_w = [r.pop(0) for _ in range(1 + num_cats)]   # [W_z, W_c0,...]
        dec_first_b = r.pop(0)
        dec_rest = [(r.pop(0), r.pop(0)) for _ in range(n_hidden - 1)]
        out_w = r.pop(0)
        out_b = r.pop(0)
        pred_ref, mu_ref, lv_ref = r                            # outputs

        cats = [c[...] for c in cat_refs]

        # ---- encoder: first layer uses row-split weights (implicit concat)
        h = dot(y_ref[...], enc_first_w[0][...])
        for c, w in zip(cats, enc_first_w[1:]):
            h = h + dot(c, w[...])
        h = jnp.maximum(h + enc_first_b[...], 0.0)
        for w, b in enc_rest:
            h = jnp.maximum(dot(h, w[...]) + b[...], 0.0)

        # ---- fused mu / log_var projection (single wide matmul)
        mv = dot(h, mv_w[...]) + mv_b[...]
        mu = mv[:, :latent_dim]
        log_var = mv[:, latent_dim:]

        # ---- reparameterize: z = eps * exp(0.5 * log_var) + mu
        z = eps_ref[...] * jnp.exp(0.5 * log_var) + mu

        # ---- decoder: first layer uses row-split weights (implicit concat)
        d = dot(z, dec_first_w[0][...])
        for c, w in zip(cats, dec_first_w[1:]):
            d = d + dot(c, w[...])
        d = jnp.maximum(d + dec_first_b[...], 0.0)
        for w, b in dec_rest:
            d = jnp.maximum(dot(d, w[...]) + b[...], 0.0)
        pred = dot(d, out_w[...]) + out_b[...]                  # no ReLU

        pred_ref[...] = pred.astype(pred_ref.dtype)
        mu_ref[...] = mu.astype(mu_ref.dtype)
        lv_ref[...] = log_var.astype(lv_ref.dtype)

    return kernel


# ----------------------------------------------------------------------------
# Parameter construction (mimics PyTorch Linear default init; weights stored
# transposed (in, out); biases stored (1, out); first-layer weights row-split)
# ----------------------------------------------------------------------------
def _init_linear(key, in_f: int, out_f: int):
    kw, kb = jax.random.split(key)
    bound = 1.0 / math.sqrt(in_f)
    w = jax.random.uniform(kw, (in_f, out_f), jnp.float32, -bound, bound)
    b = jax.random.uniform(kb, (1, out_f), jnp.float32, -bound, bound)
    return w, b


def _row_split(w, sizes):
    blocks, off = [], 0
    for sz in sizes:
        blocks.append(w[off:off + sz])
        off += sz
    return blocks


def init_cvae_params(key, input_size: int, latent_dim: int,
                     class_sizes: List[int], hidden_dims: List[int]):
    sum_cls = int(sum(class_sizes))
    n_layers = 2 * len(hidden_dims) + 3
    keys = jax.random.split(key, n_layers)
    ki = 0
    params = {}

    # encoder
    w0, b0 = _init_linear(keys[ki], input_size + sum_cls, hidden_dims[0]); ki += 1
    params["enc_first_w"] = _row_split(w0, [input_size] + list(class_sizes))
    params["enc_first_b"] = b0
    enc_rest, prev_d = [], hidden_dims[0]
    for h in hidden_dims[1:]:
        enc_rest.append(_init_linear(keys[ki], prev_d, h)); ki += 1
        prev_d = h
    params["enc_rest"] = enc_rest

    # fused mu/var head: concat mu_fc and var_fc along the output dim
    w_mu, b_mu = _init_linear(keys[ki], prev_d, latent_dim); ki += 1
    w_var, b_var = _init_linear(keys[ki], prev_d, latent_dim); ki += 1
    params["mv_w"] = jnp.concatenate([w_mu, w_var], axis=1)
    params["mv_b"] = jnp.concatenate([b_mu, b_var], axis=1)

    # decoder
    rev = list(reversed(hidden_dims))
    wd0, bd0 = _init_linear(keys[ki], latent_dim + sum_cls, rev[0]); ki += 1
    params["dec_first_w"] = _row_split(wd0, [latent_dim] + list(class_sizes))
    params["dec_first_b"] = bd0
    dec_rest, prev_d = [], rev[0]
    for h in rev[1:]:
        dec_rest.append(_init_linear(keys[ki], prev_d, h)); ki += 1
        prev_d = h
    dec_rest.append(_init_linear(keys[ki], prev_d, input_size)); ki += 1
    params["dec_rest"] = dec_rest            # (n_hidden - 1) hidden + 1 output
    return params


# ----------------------------------------------------------------------------
# Forward pass (mirrors cVAE_Sequence.forward) — one fused pallas_call
# ----------------------------------------------------------------------------
def cvae_forward(params, y, cats, eps, *, input_size, latent_dim,
                 hidden_dims, class_sizes):
    num_cats = len(class_sizes)
    n_hidden = len(hidden_dims)
    B = y.shape[0]

    inputs = [y, *cats, eps]
    inputs += list(params["enc_first_w"]) + [params["enc_first_b"]]
    for w, b in params["enc_rest"]:
        inputs += [w, b]
    inputs += [params["mv_w"], params["mv_b"]]
    inputs += list(params["dec_first_w"]) + [params["dec_first_b"]]
    for w, b in params["dec_rest"]:
        inputs += [w, b]

    kernel = _make_cvae_kernel(num_cats, n_hidden, latent_dim)
    vmem = pl.BlockSpec(memory_space=pltpu.MemorySpace.VMEM)

    out_shape = (
        jax.ShapeDtypeStruct((B, input_size), jnp.float32),   # pred_y
        jax.ShapeDtypeStruct((B, latent_dim), jnp.float32),   # mu
        jax.ShapeDtypeStruct((B, latent_dim), jnp.float32),   # log_var
    )
    # NOTE: at larger batch sizes, tile the batch dim with a grid and
    # dimension_semantics=("parallel",) so both v7x TensorCores get work.
    pred_y, mu, log_var = pl.pallas_call(
        kernel,
        out_shape=out_shape,
        in_specs=[vmem] * len(inputs),
        out_specs=(vmem, vmem, vmem),
    )(*inputs)
    return pred_y, y, mu, log_var


# ----------------------------------------------------------------------------
# Pure-JAX reference (same math, same params) for a correctness check
# ----------------------------------------------------------------------------
def cvae_forward_ref(params, y, cats, eps, *, latent_dim):
    x = jnp.concatenate([y, *cats], axis=1)
    h = jax.nn.relu(x @ jnp.concatenate(params["enc_first_w"], axis=0)
                    + params["enc_first_b"])
    for w, b in params["enc_rest"]:
        h = jax.nn.relu(h @ w + b)
    mv = h @ params["mv_w"] + params["mv_b"]
    mu, log_var = mv[:, :latent_dim], mv[:, latent_dim:]
    z = eps * jnp.exp(0.5 * log_var) + mu
    zc = jnp.concatenate([z, *cats], axis=1)
    d = jax.nn.relu(zc @ jnp.concatenate(params["dec_first_w"], axis=0)
                    + params["dec_first_b"])
    for w, b in params["dec_rest"][:-1]:
        d = jax.nn.relu(d @ w + b)
    w_o, b_o = params["dec_rest"][-1]
    return d @ w_o + b_o, mu, log_var


# ----------------------------------------------------------------------------
# Main
# ----------------------------------------------------------------------------
if __name__ == "__main__":
    batch = 8
    input_size = 16
    latent_dim = 8
    class_sizes = [3, 5]          # num_classes = 2
    hidden_dims = [32, 16]

    key = jax.random.PRNGKey(0)
    k_param, k_y, k_c0, k_c1, k_eps = jax.random.split(key, 5)

    params = init_cvae_params(k_param, input_size, latent_dim,
                              class_sizes, hidden_dims)

    y = jax.random.normal(k_y, (batch, input_size), dtype=jnp.float32)
    cats = [
        jax.nn.one_hot(jax.random.randint(k_c0, (batch,), 0, class_sizes[0]),
                       class_sizes[0], dtype=jnp.float32),
        jax.nn.one_hot(jax.random.randint(k_c1, (batch,), 0, class_sizes[1]),
                       class_sizes[1], dtype=jnp.float32),
    ]
    eps = jax.random.normal(k_eps, (batch, latent_dim), dtype=jnp.float32)

    pred_y, y_out, mu, log_var = cvae_forward(
        params, y, cats, eps,
        input_size=input_size, latent_dim=latent_dim,
        hidden_dims=hidden_dims, class_sizes=class_sizes)
    jax.block_until_ready((pred_y, y_out, mu, log_var))

    assert pred_y.shape == (batch, input_size)
    assert y_out.shape == (batch, input_size)
    assert mu.shape == (batch, latent_dim)
    assert log_var.shape == (batch, latent_dim)

    # correctness check against the pure-JAX reference of the same module
    p_ref, m_ref, lv_ref = cvae_forward_ref(params, y, cats, eps,
                                            latent_dim=latent_dim)
    assert jnp.allclose(pred_y, p_ref, atol=2e-4, rtol=2e-4)
    assert jnp.allclose(mu, m_ref, atol=2e-4, rtol=2e-4)
    assert jnp.allclose(log_var, lv_ref, atol=2e-4, rtol=2e-4)

    print("KERNEL_OK")
</pallas_src>

<mosaic_0001>
module attributes {stable_mosaic.version = 11 : i64} {
  func.func @kernel(%arg0: memref<8x16xf32, #tpu.memory_space<vmem>>, %arg1: memref<8x3xf32, #tpu.memory_space<vmem>>, %arg2: memref<8x5xf32, #tpu.memory_space<vmem>>, %arg3: memref<8x8xf32, #tpu.memory_space<vmem>>, %arg4: memref<16x32xf32, #tpu.memory_space<vmem>>, %arg5: memref<3x32xf32, #tpu.memory_space<vmem>>, %arg6: memref<5x32xf32, #tpu.memory_space<vmem>>, %arg7: memref<1x32xf32, #tpu.memory_space<vmem>>, %arg8: memref<32x16xf32, #tpu.memory_space<vmem>>, %arg9: memref<1x16xf32, #tpu.memory_space<vmem>>, %arg10: memref<16x16xf32, #tpu.memory_space<vmem>>, %arg11: memref<1x16xf32, #tpu.memory_space<vmem>>, %arg12: memref<8x16xf32, #tpu.memory_space<vmem>>, %arg13: memref<3x16xf32, #tpu.memory_space<vmem>>, %arg14: memref<5x16xf32, #tpu.memory_space<vmem>>, %arg15: memref<1x16xf32, #tpu.memory_space<vmem>>, %arg16: memref<16x32xf32, #tpu.memory_space<vmem>>, %arg17: memref<1x32xf32, #tpu.memory_space<vmem>>, %arg18: memref<32x16xf32, #tpu.memory_space<vmem>>, %arg19: memref<1x16xf32, #tpu.memory_space<vmem>>, %arg20: memref<8x16xf32, #tpu.memory_space<vmem>>, %arg21: memref<8x8xf32, #tpu.memory_space<vmem>>, %arg22: memref<8x8xf32, #tpu.memory_space<vmem>>) attributes {dimension_semantics = [], scalar_prefetch = 0 : i64, scratch_operands = 0 : i64, tpu.core_type = #tpu.core_type<tc>} {
    %c0 = arith.constant 0 : index
    %c0_0 = arith.constant 0 : index
    %0 = vector.load %arg1[%c0, %c0_0] : memref<8x3xf32, #tpu.memory_space<vmem>>, vector<8x3xf32>
    %c0_1 = arith.constant 0 : index
    %c0_2 = arith.constant 0 : index
    %1 = vector.load %arg2[%c0_1, %c0_2] : memref<8x5xf32, #tpu.memory_space<vmem>>, vector<8x5xf32>
    %c0_3 = arith.constant 0 : index
    %c0_4 = arith.constant 0 : index
    %2 = vector.load %arg0[%c0_3, %c0_4] : memref<8x16xf32, #tpu.memory_space<vmem>>, vector<8x16xf32>
    %c0_5 = arith.constant 0 : index
    %c0_6 = arith.constant 0 : index
    %3 = vector.load %arg4[%c0_5, %c0_6] : memref<16x32xf32, #tpu.memory_space<vmem>>, vector<16x32xf32>
    %cst = arith.constant dense<0.000000e+00> : vector<8x32xf32>
    %4 = tpu.matmul %2, %3, %cst {dimension_numbers = #tpu.dot_dimension_numbers<[1], [0], [0], [1], [0, 0, 1, 1], [], []>} : vector<8x16xf32>, vector<16x32xf32>, vector<8x32xf32> -> vector<8x32xf32>
    %c0_7 = arith.constant 0 : index
    %c0_8 = arith.constant 0 : index
    %5 = vector.load %arg5[%c0_7, %c0_8] : memref<3x32xf32, #tpu.memory_space<vmem>>, vector<3x32xf32>
    %cst_9 = arith.constant dense<0.000000e+00> : vector<8x32xf32>
    %6 = tpu.matmul %0, %5, %cst_9 {dimension_numbers = #tpu.dot_dimension_numbers<[1], [0], [0], [1], [0, 0, 1, 1], [], []>} : vector<8x3xf32>, vector<3x32xf32>, vector<8x32xf32> -> vector<8x32xf32>
    %7 = arith.addf %4, %6 : vector<8x32xf32>
    %c0_10 = arith.constant 0 : index
    %c0_11 = arith.constant 0 : index
    %8 = vector.load %arg6[%c0_10, %c0_11] : memref<5x32xf32, #tpu.memory_space<vmem>>, vector<5x32xf32>
    %cst_12 = arith.constant dense<0.000000e+00> : vector<8x32xf32>
    %9 = tpu.matmul %1, %8, %cst_12 {dimension_numbers = #tpu.dot_dimension_numbers<[1], [0], [0], [1], [0, 0, 1, 1], [], []>} : vector<8x5xf32>, vector<5x32xf32>, vector<8x32xf32> -> vector<8x32xf32>
    %10 = arith.addf %7, %9 : vector<8x32xf32>
    %c0_13 = arith.constant 0 : index
    %c0_14 = arith.constant 0 : index
    %11 = vector.load %arg7[%c0_13, %c0_14] : memref<1x32xf32, #tpu.memory_space<vmem>>, vector<1x32xf32>
    %12 = vector.broadcast %11 : vector<1x32xf32> to vector<8x32xf32>
    %13 = arith.addf %10, %12 : vector<8x32xf32>
    %cst_15 = arith.constant 0.000000e+00 : f32
    %14 = vector.broadcast %cst_15 : f32 to vector<8x32xf32>
    %15 = arith.maximumf %13, %14 : vector<8x32xf32>
    %c0_16 = arith.constant 0 : index
    %c0_17 = arith.constant 0 : index
    %16 = vector.load %arg8[%c0_16, %c0_17] : memref<32x16xf32, #tpu.memory_space<vmem>>, vector<32x16xf32>
    %cst_18 = arith.constant dense<0.000000e+00> : vector<8x16xf32>
    %17 = tpu.matmul %15, %16, %cst_18 {dimension_numbers = #tpu.dot_dimension_numbers<[1], [0], [0], [1], [0, 0, 1, 1], [], []>} : vector<8x32xf32>, vector<32x16xf32>, vector<8x16xf32> -> vector<8x16xf32>
    %c0_19 = arith.constant 0 : index
    %c0_20 = arith.constant 0 : index
    %18 = vector.load %arg9[%c0_19, %c0_20] : memref<1x16xf32, #tpu.memory_space<vmem>>, vector<1x16xf32>
    %19 = vector.broadcast %18 : vector<1x16xf32> to vector<8x16xf32>
    %20 = arith.addf %17, %19 : vector<8x16xf32>
    %cst_21 = arith.constant 0.000000e+00 : f32
    %21 = vector.broadcast %cst_21 : f32 to vector<8x16xf32>
    %22 = arith.maximumf %20, %21 : vector<8x16xf32>
    %c0_22 = arith.constant 0 : index
    %c0_23 = arith.constant 0 : index
    %23 = vector.load %arg10[%c0_22, %c0_23] : memref<16x16xf32, #tpu.memory_space<vmem>>, vector<16x16xf32>
    %cst_24 = arith.constant dense<0.000000e+00> : vector<8x16xf32>
    %24 = tpu.matmul %22, %23, %cst_24 {dimension_numbers = #tpu.dot_dimension_numbers<[1], [0], [0], [1], [0, 0, 1, 1], [], []>} : vector<8x16xf32>, vector<16x16xf32>, vector<8x16xf32> -> vector<8x16xf32>
    %c0_25 = arith.constant 0 : index
    %c0_26 = arith.constant 0 : index
    %25 = vector.load %arg11[%c0_25, %c0_26] : memref<1x16xf32, #tpu.memory_space<vmem>>, vector<1x16xf32>
    %26 = vector.broadcast %25 : vector<1x16xf32> to vector<8x16xf32>
    %27 = arith.addf %24, %26 : vector<8x16xf32>
    %28 = vector.extract_strided_slice %27 {offsets = [0, 0], sizes = [8, 8], strides = [1, 1]} : vector<8x16xf32> to vector<8x8xf32>
    %29 = vector.extract_strided_slice %27 {offsets = [0, 8], sizes = [8, 8], strides = [1, 1]} : vector<8x16xf32> to vector<8x8xf32>
    %c0_27 = arith.constant 0 : index
    %c0_28 = arith.constant 0 : index
    %30 = vector.load %arg3[%c0_27, %c0_28] : memref<8x8xf32, #tpu.memory_space<vmem>>, vector<8x8xf32>
    %cst_29 = arith.constant 5.000000e-01 : f32
    %31 = vector.broadcast %cst_29 : f32 to vector<8x8xf32>
    %32 = arith.mulf %31, %29 : vector<8x8xf32>
    %33 = math.exp %32 : vector<8x8xf32>
    %34 = arith.mulf %30, %33 : vector<8x8xf32>
    %35 = arith.addf %34, %28 : vector<8x8xf32>
    %c0_30 = arith.constant 0 : index
    %c0_31 = arith.constant 0 : index
    %36 = vector.load %arg12[%c0_30, %c0_31] : memref<8x16xf32, #tpu.memory_space<vmem>>, vector<8x16xf32>
    %cst_32 = arith.constant dense<0.000000e+00> : vector<8x16xf32>
    %37 = tpu.matmul %35, %36, %cst_32 {dimension_numbers = #tpu.dot_dimension_numbers<[1], [0], [0], [1], [0, 0, 1, 1], [], []>} : vector<8x8xf32>, vector<8x16xf32>, vector<8x16xf32> -> vector<8x16xf32>
    %c0_33 = arith.constant 0 : index
    %c0_34 = arith.constant 0 : index
    %38 = vector.load %arg13[%c0_33, %c0_34] : memref<3x16xf32, #tpu.memory_space<vmem>>, vector<3x16xf32>
    %cst_35 = arith.constant dense<0.000000e+00> : vector<8x16xf32>
    %39 = tpu.matmul %0, %38, %cst_35 {dimension_numbers = #tpu.dot_dimension_numbers<[1], [0], [0], [1], [0, 0, 1, 1], [], []>} : vector<8x3xf32>, vector<3x16xf32>, vector<8x16xf32> -> vector<8x16xf32>
    %40 = arith.addf %37, %39 : vector<8x16xf32>
    %c0_36 = arith.constant 0 : index
    %c0_37 = arith.constant 0 : index
    %41 = vector.load %arg14[%c0_36, %c0_37] : memref<5x16xf32, #tpu.memory_space<vmem>>, vector<5x16xf32>
    %cst_38 = arith.constant dense<0.000000e+00> : vector<8x16xf32>
    %42 = tpu.matmul %1, %41, %cst_38 {dimension_numbers = #tpu.dot_dimension_numbers<[1], [0], [0], [1], [0, 0, 1, 1], [], []>} : vector<8x5xf32>, vector<5x16xf32>, vector<8x16xf32> -> vector<8x16xf32>
    %43 = arith.addf %40, %42 : vector<8x16xf32>
    %c0_39 = arith.constant 0 : index
    %c0_40 = arith.constant 0 : index
    %44 = vector.load %arg15[%c0_39, %c0_40] : memref<1x16xf32, #tpu.memory_space<vmem>>, vector<1x16xf32>
    %45 = vector.broadcast %44 : vector<1x16xf32> to vector<8x16xf32>
    %46 = arith.addf %43, %45 : vector<8x16xf32>
    %cst_41 = arith.constant 0.000000e+00 : f32
    %47 = vector.broadcast %cst_41 : f32 to vector<8x16xf32>
    %48 = arith.maximumf %46, %47 : vector<8x16xf32>
    %c0_42 = arith.constant 0 : index
    %c0_43 = arith.constant 0 : index
    %49 = vector.load %arg16[%c0_42, %c0_43] : memref<16x32xf32, #tpu.memory_space<vmem>>, vector<16x32xf32>
    %cst_44 = arith.constant dense<0.000000e+00> : vector<8x32xf32>
    %50 = tpu.matmul %48, %49, %cst_44 {dimension_numbers = #tpu.dot_dimension_numbers<[1], [0], [0], [1], [0, 0, 1, 1], [], []>} : vector<8x16xf32>, vector<16x32xf32>, vector<8x32xf32> -> vector<8x32xf32>
    %c0_45 = arith.constant 0 : index
    %c0_46 = arith.constant 0 : index
    %51 = vector.load %arg17[%c0_45, %c0_46] : memref<1x32xf32, #tpu.memory_space<vmem>>, vector<1x32xf32>
    %52 = vector.broadcast %51 : vector<1x32xf32> to vector<8x32xf32>
    %53 = arith.addf %50, %52 : vector<8x32xf32>
    %cst_47 = arith.constant 0.000000e+00 : f32
    %54 = vector.broadcast %cst_47 : f32 to vector<8x32xf32>
    %55 = arith.maximumf %53, %54 : vector<8x32xf32>
    %c0_48 = arith.constant 0 : index
    %c0_49 = arith.constant 0 : index
    %56 = vector.load %arg18[%c0_48, %c0_49] : memref<32x16xf32, #tpu.memory_space<vmem>>, vector<32x16xf32>
    %cst_50 = arith.constant dense<0.000000e+00> : vector<8x16xf32>
    %57 = tpu.matmul %55, %56, %cst_50 {dimension_numbers = #tpu.dot_dimension_numbers<[1], [0], [0], [1], [0, 0, 1, 1], [], []>} : vector<8x32xf32>, vector<32x16xf32>, vector<8x16xf32> -> vector<8x16xf32>
    %c0_51 = arith.constant 0 : index
    %c0_52 = arith.constant 0 : index
    %58 = vector.load %arg19[%c0_51, %c0_52] : memref<1x16xf32, #tpu.memory_space<vmem>>, vector<1x16xf32>
    %59 = vector.broadcast %58 : vector<1x16xf32> to vector<8x16xf32>
    %60 = arith.addf %57, %59 : vector<8x16xf32>
    %c0_53 = arith.constant 0 : index
    %c0_54 = arith.constant 0 : index
    %61 = vector.load %arg20[%c0_53, %c0_54] : memref<8x16xf32, #tpu.memory_space<vmem>>, vector<8x16xf32>
    tpu.vector_store %arg20[%c0_53, %c0_54], %60 {strides = array<i32>} : memref<8x16xf32, #tpu.memory_space<vmem>>, vector<8x16xf32>,
    %c0_55 = arith.constant 0 : index
    %c0_56 = arith.constant 0 : index
    %62 = vector.load %arg21[%c0_55, %c0_56] : memref<8x8xf32, #tpu.memory_space<vmem>>, vector<8x8xf32>
    tpu.vector_store %arg21[%c0_55, %c0_56], %28 {strides = array<i32>} : memref<8x8xf32, #tpu.memory_space<vmem>>, vector<8x8xf32>,
    %c0_57 = arith.constant 0 : index
    %c0_58 = arith.constant 0 : index
    %63 = vector.load %arg22[%c0_57, %c0_58] : memref<8x8xf32, #tpu.memory_space<vmem>>, vector<8x8xf32>
    tpu.vector_store %arg22[%c0_57, %c0_58], %29 {strides = array<i32>} : memref<8x8xf32, #tpu.memory_space<vmem>>, vector<8x8xf32>,
    return
  }
}

</mosaic_0001>

<llo_original>
// kernel: tpu_custom_call.1
$region0: #{tpu_custom_call.1}
  #allocation0 [shape = 'u32[]', space=smem, size = 0x4, offset = 0x4, fixed_abs, tag = 'smem constant byte address 0x4 - core index']
  #allocation1 [shape = 'u32[144,128]{1,0:T(1,128)}', space=vmem, size = 0x12000, scoped, tag = 'internal scratch']
  %s0 = inlined_call_operand.vmem [shape: f32[8,16], index: 0, kind: input, shape index: {}]
  %s1 = inlined_call_operand.vmem [shape: f32[8,3], index: 1, kind: input, shape index: {}]
  %s2 = inlined_call_operand.vmem [shape: f32[8,5], index: 2, kind: input, shape index: {}]
  %s3 = inlined_call_operand.vmem [shape: f32[8,8], index: 3, kind: input, shape index: {}]
  %s4 = inlined_call_operand.vmem [shape: f32[16,32], index: 4, kind: input, shape index: {}]
  %s5 = inlined_call_operand.hbm [shape: f32[3,32], index: 5, kind: input, shape index: {}]
  %s6 = inlined_call_operand.vmem [shape: f32[5,32], index: 6, kind: input, shape index: {}]
  %s7 = inlined_call_operand.hbm [shape: f32[1,32], index: 7, kind: input, shape index: {}]
  %s8 = inlined_call_operand.vmem [shape: f32[32,16], index: 8, kind: input, shape index: {}]
  %s9 = inlined_call_operand.hbm [shape: f32[1,16], index: 9, kind: input, shape index: {}]
  %s10 = inlined_call_operand.vmem [shape: f32[16,16], index: 10, kind: input, shape index: {}]
  %s11 = inlined_call_operand.hbm [shape: f32[1,16], index: 11, kind: input, shape index: {}]
  %s12 = inlined_call_operand.vmem [shape: f32[8,16], index: 12, kind: input, shape index: {}]
  %s13 = inlined_call_operand.hbm [shape: f32[3,16], index: 13, kind: input, shape index: {}]
  %s14 = inlined_call_operand.vmem [shape: f32[5,16], index: 14, kind: input, shape index: {}]
  %s15 = inlined_call_operand.vmem [shape: f32[1,16], index: 15, kind: input, shape index: {}]
  %s16 = inlined_call_operand.vmem [shape: f32[16,32], index: 16, kind: input, shape index: {}]
  %s17 = inlined_call_operand.vmem [shape: f32[1,32], index: 17, kind: input, shape index: {}]
  %s18 = inlined_call_operand.vmem [shape: f32[32,16], index: 18, kind: input, shape index: {}]
  %s19 = inlined_call_operand.vmem [shape: f32[1,16], index: 19, kind: input, shape index: {}]
  %s20 = inlined_call_operand.hbm [shape: f32[8,16], index: 20, kind: output, shape index: {0}]
  %s21 = inlined_call_operand.hbm [shape: f32[8,8], index: 21, kind: output, shape index: {1}]
  %s22 = inlined_call_operand.hbm [shape: f32[8,8], index: 22, kind: output, shape index: {2}]
  %23 = xla_tuple %s20, %s21, %s22
  %s24 = sld [smem:[#allocation0]]
  $region126: #{tpu_custom_call.1} parent=0
    _
  %s26 = ssub.s32 1, %s24
  %s27 = scalar_select 0, %s26, %s24
  $region1: #{tpu_custom_call.1} parent=0
    #allocation2 [shape = 'u8[2048]{0}', space=vmem, size = 0x800, scoped, tag = 'input window, operand 5, single buffered']
    #allocation3 [shape = 's32[1]{0}', space=sflag, size = 0x4, scoped, tag = 'scoped memory for tpu_custom_call.1']
    #allocation4 [shape = 's32[1]{0}', space=sflag, size = 0x4, scoped, tag = 'scoped memory for tpu_custom_call.1']
    #allocation5 [shape = 'u8[512]{0}', space=vmem, size = 0x400, scoped, tag = 'input window, operand 7, single buffered']
    #allocation6 [shape = 's32[1]{0}', space=sflag, size = 0x4, scoped, tag = 'scoped memory for tpu_custom_call.1']
    #allocation7 [shape = 'u8[512]{0}', space=vmem, size = 0x400, scoped, tag = 'input window, operand 9, single buffered']
    #allocation8 [shape = 'u8[512]{0}', space=vmem, size = 0x400, scoped, tag = 'input window, operand 11, single buffered']
    #allocation9 [shape = 's32[1]{0}', space=sflag, size = 0x4, scoped, tag = 'scoped memory for tpu_custom_call.1']
    #allocation10 [shape = 'u8[2048]{0}', space=vmem, size = 0x800, scoped, tag = 'input window, operand 13, single buffered']
    #allocation11 [shape = 'u8[4096]{0}', space=vmem, size = 0x1000, scoped, tag = 'output window, operand 0, single buffered']
    #allocation12 [shape = 'u8[4096]{0}', space=vmem, size = 0x1000, scoped, tag = 'output window, operand 1, single buffered']
    #allocation13 [shape = 's32[1]{0}', space=sflag, size = 0x4, scoped, tag = 'scoped memory for tpu_custom_call.1']
    #allocation14 [shape = 'u8[4096]{0}', space=vmem, size = 0x1000, scoped, tag = 'output window, operand 2, single buffered']
    %28 = vsyncpa [#allocation3], 0
    %29 = vsyncpa [#allocation6], 0
    %30 = vsyncpa [#allocation9], 0
    %31 = vsyncpa [#allocation4], 0
    %32 = vsyncpa [#allocation13], 0
    // Predicated region
    $region2: #{tpu_custom_call.1} parent=1 // pred_check
      _
    $region3: #{tpu_custom_call.1} parent=1 // pred_check_branch
      %34 = sbr.rel (0) target = $region5
    $region4: #{tpu_custom_call.1} parent=1 // pred_region
      _
    $region5: #{tpu_custom_call.1} parent=1 // pred_fallthru
      _
    // Predicated region
    $region6: #{tpu_custom_call.1} parent=1 // pred_check
      _
    $region7: #{tpu_custom_call.1} parent=1 // pred_check_branch
      %36 = sbr.rel (0) target = $region9
    $region8: #{tpu_custom_call.1} parent=1 // pred_region
      _
    $region9: #{tpu_custom_call.1} parent=1 // pred_fallthru
      _
    // Predicated region
    $region10: #{tpu_custom_call.1} parent=1 // pred_check
      _
    $region11: #{tpu_custom_call.1} parent=1 // pred_check_branch
      %38 = sbr.rel (0) target = $region13
    $region12: #{tpu_custom_call.1} parent=1 // pred_region
      _
    $region13: #{tpu_custom_call.1} parent=1 // pred_fallthru
      _
    // Predicated region
    $region14: #{tpu_custom_call.1} parent=1 // pred_check
      _
    $region15: #{tpu_custom_call.1} parent=1 // pred_check_branch
      %40 = sbr.rel (0) target = $region17
    $region16: #{tpu_custom_call.1} parent=1 // pred_region
      _
    $region17: #{tpu_custom_call.1} parent=1 // pred_fallthru
      _
    // Predicated region
    $region18: #{tpu_custom_call.1} parent=1 // pred_check
      _
    $region19: #{tpu_custom_call.1} parent=1 // pred_check_branch
      %42 = sbr.rel (0) target = $region21
    $region20: #{tpu_custom_call.1} parent=1 // pred_region
      _
    $region21: #{tpu_custom_call.1} parent=1 // pred_fallthru
      _
    // Predicated region
    $region22: #{tpu_custom_call.1} parent=1 // pred_check
      _
    $region23: #{tpu_custom_call.1} parent=1 // pred_check_branch
      %44 = sbr.rel (0) target = $region25
    $region24: #{tpu_custom_call.1} parent=1 // pred_region
      %s46 = ssub.s32 64, 64
      %47 = vsyncadd [#allocation3], %s46
      %s49 = sshll.u32 [#allocation2], 4
      %s50 = int_to_ptr.vmem [resolvable:$true] %s49
      %52 = dma.hbm_to_vmem [thread:$0]  %s5, 64, %s50, [#allocation3]
    $region25: #{tpu_custom_call.1} parent=1 // pred_fallthru
      _
    // Predicated region
    $region26: #{tpu_custom_call.1} parent=1 // pred_check
      _
    $region27: #{tpu_custom_call.1} parent=1 // pred_check_branch
      %54 = sbr.rel (0) target = $region29
    $region28: #{tpu_custom_call.1} parent=1 // pred_region
      _
    $region29: #{tpu_custom_call.1} parent=1 // pred_fallthru
      _
    // Predicated region
    $region30: #{tpu_custom_call.1} parent=1 // pred_check
      _
    $region31: #{tpu_custom_call.1} parent=1 // pred_check_branch
      %56 = sbr.rel (0) target = $region33
    $region32: #{tpu_custom_call.1} parent=1 // pred_region
      %s58 = ssub.s32 16, 16
      %59 = vsyncadd [#allocation6], %s58
      %s61 = sshll.u32 [#allocation5], 4
      %s62 = int_to_ptr.vmem [resolvable:$true] %s61
      %64 = dma.hbm_to_vmem [thread:$0]  %s7, 16, %s62, [#allocation6]
    $region33: #{tpu_custom_call.1} parent=1 // pred_fallthru
      _
    // Predicated region
    $region34: #{tpu_custom_call.1} parent=1 // pred_check
      _
    $region35: #{tpu_custom_call.1} parent=1 // pred_check_branch
      %66 = sbr.rel (0) target = $region37
    $region36: #{tpu_custom_call.1} parent=1 // pred_region
      _
    $region37: #{tpu_custom_call.1} parent=1 // pred_fallthru
      _
    // Predicated region
    $region38: #{tpu_custom_call.1} parent=1 // pred_check
      _
    $region39: #{tpu_custom_call.1} parent=1 // pred_check_branch
      %68 = sbr.rel (0) target = $region41
    $region40: #{tpu_custom_call.1} parent=1 // pred_region
      %s70 = ssub.s32 16, 16
      %71 = vsyncadd [#allocation6], %s70
      %s73 = sshll.u32 [#allocation7], 4
      %s74 = int_to_ptr.vmem [resolvable:$true] %s73
      %76 = dma.hbm_to_vmem [thread:$0]  %s9, 16, %s74, [#allocation6]
    $region41: #{tpu_custom_call.1} parent=1 // pred_fallthru
      _
    // Predicated region
    $region42: #{tpu_custom_call.1} parent=1 // pred_check
      _
    $region43: #{tpu_custom_call.1} parent=1 // pred_check_branch
      %78 = sbr.rel (0) target = $region45
    $region44: #{tpu_custom_call.1} parent=1 // pred_region
      _
    $region45: #{tpu_custom_call.1} parent=1 // pred_fallthru
      _
    // Predicated region
    $region46: #{tpu_custom_call.1} parent=1 // pred_check
      _
    $region47: #{tpu_custom_call.1} parent=1 // pred_check_branch
      %80 = sbr.rel (0) target = $region49
    $region48: #{tpu_custom_call.1} parent=1 // pred_region
      %s82 = ssub.s32 16, 16
      %83 = vsyncadd [#allocation9], %s82
      %s85 = sshll.u32 [#allocation8], 4
      %s86 = int_to_ptr.vmem [resolvable:$true] %s85
      %88 = dma.hbm_to_vmem [thread:$0]  %s11, 16, %s86, [#allocation9]
    $region49: #{tpu_custom_call.1} parent=1 // pred_fallthru
      _
    // Predicated region
    $region50: #{tpu_custom_call.1} parent=1 // pred_check
      _
    $region51: #{tpu_custom_call.1} parent=1 // pred_check_branch
      %90 = sbr.rel (0) target = $region53
    $region52: #{tpu_custom_call.1} parent=1 // pred_region
      _
    $region53: #{tpu_custom_call.1} parent=1 // pred_fallthru
      _
    // Predicated region
    $region54: #{tpu_custom_call.1} parent=1 // pred_check
      _
    $region55: #{tpu_custom_call.1} parent=1 // pred_check_branch
      %92 = sbr.rel (0) target = $region57
    $region56: #{tpu_custom_call.1} parent=1 // pred_region
      %s94 = ssub.s32 64, 64
      %95 = vsyncadd [#allocation9], %s94
      %s97 = sshll.u32 [#allocation10], 4
      %s98 = int_to_ptr.vmem [resolvable:$true] %s97
      %100 = dma.hbm_to_vmem [thread:$0]  %s13, 64, %s98, [#allocation9]
    $region57: #{tpu_custom_call.1} parent=1 // pred_fallthru
      _
    // Predicated region
    $region58: #{tpu_custom_call.1} parent=1 // pred_check
      _
    $region59: #{tpu_custom_call.1} parent=1 // pred_check_branch
      %102 = sbr.rel (0) target = $region61
    $region60: #{tpu_custom_call.1} parent=1 // pred_region
      _
    $region61: #{tpu_custom_call.1} parent=1 // pred_fallthru
      _
    // Predicated region
    $region62: #{tpu_custom_call.1} parent=1 // pred_check
      _
    $region63: #{tpu_custom_call.1} parent=1 // pred_check_branch
      %104 = sbr.rel (0) target = $region65
    $region64: #{tpu_custom_call.1} parent=1 // pred_region
      _
    $region65: #{tpu_custom_call.1} parent=1 // pred_fallthru
      _
    // Predicated region
    $region66: #{tpu_custom_call.1} parent=1 // pred_check
      _
    $region67: #{tpu_custom_call.1} parent=1 // pred_check_branch
      %106 = sbr.rel (0) target = $region69
    $region68: #{tpu_custom_call.1} parent=1 // pred_region
      _
    $region69: #{tpu_custom_call.1} parent=1 // pred_fallthru
      _
    // Predicated region
    $region70: #{tpu_custom_call.1} parent=1 // pred_check
      _
    $region71: #{tpu_custom_call.1} parent=1 // pred_check_branch
      %108 = sbr.rel (0) target = $region73
    $region72: #{tpu_custom_call.1} parent=1 // pred_region
      _
    $region73: #{tpu_custom_call.1} parent=1 // pred_fallthru
      _
    // Predicated region
    $region74: #{tpu_custom_call.1} parent=1 // pred_check
      _
    $region75: #{tpu_custom_call.1} parent=1 // pred_check_branch
      %110 = sbr.rel (0) target = $region77
    $region76: #{tpu_custom_call.1} parent=1 // pred_region
      _
    $region77: #{tpu_custom_call.1} parent=1 // pred_fallthru
      _
    // Predicated region
    $region78: #{tpu_custom_call.1} parent=1 // pred_check
      _
    $region79: #{tpu_custom_call.1} parent=1 // pred_check_branch
      %112 = sbr.rel (0) target = $region81
    $region80: #{tpu_custom_call.1} parent=1 // pred_region
      _
    $region81: #{tpu_custom_call.1} parent=1 // pred_fallthru
      _
    // Predicated region
    $region82: #{tpu_custom_call.1} parent=1 // pred_check
      _
    $region83: #{tpu_custom_call.1} parent=1 // pred_check_branch
      %114 = sbr.rel (0) target = $region85
    $region84: #{tpu_custom_call.1} parent=1 // pred_region
      %115 = dma.done [#allocation3], 64
    $region85: #{tpu_custom_call.1} parent=1 // pred_fallthru
      _
    // Predicated region
    $region86: #{tpu_custom_call.1} parent=1 // pred_check
      _
    $region87: #{tpu_custom_call.1} parent=1 // pred_check_branch
      %117 = sbr.rel (0) target = $region89
    $region88: #{tpu_custom_call.1} parent=1 // pred_region
      %118 = dma.done [#allocation6], 16
    $region89: #{tpu_custom_call.1} parent=1 // pred_fallthru
      _
    // Predicated region
    $region90: #{tpu_custom_call.1} parent=1 // pred_check
      _
    $region91: #{tpu_custom_call.1} parent=1 // pred_check_branch
      %120 = sbr.rel (0) target = $region93
    $region92: #{tpu_custom_call.1} parent=1 // pred_region
      %121 = dma.done [#allocation6], 16
    $region93: #{tpu_custom_call.1} parent=1 // pred_fallthru
      _
    // Predicated region
    $region94: #{tpu_custom_call.1} parent=1 // pred_check
      _
    $region95: #{tpu_custom_call.1} parent=1 // pred_check_branch
      %123 = sbr.rel (0) target = $region97
    $region96: #{tpu_custom_call.1} parent=1 // pred_region
      %124 = dma.done [#allocation9], 16
    $region97: #{tpu_custom_call.1} parent=1 // pred_fallthru
      _
    // Predicated region
    $region98: #{tpu_custom_call.1} parent=1 // pred_check
      _
    $region99: #{tpu_custom_call.1} parent=1 // pred_check_branch
      %126 = sbr.rel (0) target = $region101
    $region100: #{tpu_custom_call.1} parent=1 // pred_region
      %127 = dma.done [#allocation9], 64
    $region101: #{tpu_custom_call.1} parent=1 // pred_fallthru
      _
    %v128 = vld [vmem:[%s1] sm:$0xff]
    %v129 = vld [vmem:[%s2] sm:$0xff]
    %v130 = vld [vmem:[%s0] sm:$0xff]
    %v131 = vld [vmem:[%s4] sm:$0xff]
    %v132 = vld [vmem:[%s4 + $0x8] sm:$0xff]
    %v133 = vld [vmem:[#allocation2] sm:$0x7]
    %vm134 = vcmask 23552
    %v136 = vsel %vm134, %v128, 0
    %vm138 = vcmask 1042432
    %v140 = vsel %vm138, %v133, 0
    %142 = vmatprep.subr.mxu0 0.0
    %143 = vmatpush1.msra.mxu0 0.0
    %144 = vmatprep.subr.mxu0 0.0
    %145 = vmatpush1.msra.mxu0 0.0
    %146 = vmatprep.subr.mxu0 0.0
    %147 = vmatpush1.msra.mxu0 0.0
    %148 = vmatprep.subr.mxu0 0.0
    %149 = vmatpush1.msra.mxu0 0.0
    %150 = vmatprep.subr.mxu0 0.0
    %151 = vmatpush1.msra.mxu0 0.0
    %152 = vmatprep.subr.mxu0 0.0
    %153 = vmatpush1.msra.mxu0 0.0
    %154 = vmatprep.subr.mxu0 0.0
    %155 = vmatpush1.msra.mxu0 0.0
    %156 = vmatprep.subr.mxu0 0.0
    %157 = vmatpush1.msra.mxu0 0.0
    %158 = vmatprep.subr.mxu0 0.0
    %159 = vmatpush1.msra.mxu0 0.0
    %160 = vmatprep.subr.mxu0 0.0
    %161 = vmatpush1.msra.mxu0 0.0
    %162 = vmatprep.subr.mxu0 0.0
    %163 = vmatpush1.msra.mxu0 0.0
    %164 = vmatprep.subr.mxu0 0.0
    %165 = vmatpush1.msra.mxu0 0.0
    %166 = vmatprep.subr.mxu0 0.0
    %167 = vmatpush1.msra.mxu0 0.0
    %168 = vmatprep.subr.mxu0 0.0
    %169 = vmatpush1.msra.mxu0 0.0
    %170 = vmatprep.subr.mxu0 0.0
    %171 = vmatpush1.msra.mxu0 0.0
    %172 = vmatprep.subr.mxu0 0.0
    %173 = vmatpush1.msra.mxu0 %v140
    %174 = vmatprep.subr.mxu0 0.0
    %175 = vmatpush2.msra.mxu0 0.0
    %176 = vmatprep.subr.mxu0 0.0
    %177 = vmatpush2.msra.mxu0 0.0
    %178 = vmatprep.subr.mxu0 0.0
    %179 = vmatpush2.msra.mxu0 0.0
    %180 = vmatprep.subr.mxu0 0.0
    %181 = vmatpush2.msra.mxu0 0.0
    %182 = vmatprep.subr.mxu0 0.0
    %183 = vmatpush2.msra.mxu0 0.0
    %184 = vmatprep.subr.mxu0 0.0
    %185 = vmatpush2.msra.mxu0 0.0
    %186 = vmatprep.subr.mxu0 0.0
    %187 = vmatpush2.msra.mxu0 0.0
    %188 = vmatprep.subr.mxu0 0.0
    %189 = vmatpush2.msra.mxu0 0.0
    %190 = vmatprep.subr.mxu0 0.0
    %191 = vmatpush2.msra.mxu0 0.0
    %192 = vmatprep.subr.mxu0 0.0
    %193 = vmatpush2.msra.mxu0 0.0
    %194 = vmatprep.subr.mxu0 0.0
    %195 = vmatpush2.msra.mxu0 0.0
    %196 = vmatprep.subr.mxu0 0.0
    %197 = vmatpush2.msra.mxu0 0.0
    %198 = vmatprep.subr.mxu0 0.0
    %199 = vmatpush2.msra.mxu0 0.0
    %200 = vmatprep.subr.mxu0 0.0
    %201 = vmatpush2.msra.mxu0 0.0
    %202 = vmatprep.subr.mxu0 0.0
    %203 = vmatpush2.msra.mxu0 0.0
    %204 = vmatprep.subr.mxu0 0.0
    %205 = vmatpush2.msra.mxu0 0.0
    %206 = vmatprep.mubr.f32.mxu0 0.0
    %207 = vmatmul.mubr.f32.gmra.mxu0 %v136
    %v208 = vpop.f32.mrf.mxu0
    %v209 = vadd.f32 0.0, %v208
    %v210 = vpop.f32.mrf.mxu0
    %211 = vdwg.mxu0
    %vm212 = vcmask 130048
    %v214 = vsel %vm212, %v130, 0
    %216 = vmatprep.subr.mxu0 0.0
    %217 = vmatpush1.msra.mxu0 0.0
    %218 = vmatprep.subr.mxu0 0.0
    %219 = vmatpush1.msra.mxu0 0.0
    %220 = vmatprep.subr.mxu0 0.0
    %221 = vmatpush1.msra.mxu0 0.0
    %222 = vmatprep.subr.mxu0 0.0
    %223 = vmatpush1.msra.mxu0 0.0
    %224 = vmatprep.subr.mxu0 0.0
    %225 = vmatpush1.msra.mxu0 0.0
    %226 = vmatprep.subr.mxu0 0.0
    %227 = vmatpush1.msra.mxu0 0.0
    %228 = vmatprep.subr.mxu0 0.0
    %229 = vmatpush1.msra.mxu0 0.0
    %230 = vmatprep.subr.mxu0 0.0
    %231 = vmatpush1.msra.mxu0 0.0
    %232 = vmatprep.subr.mxu0 0.0
    %233 = vmatpush1.msra.mxu0 0.0
    %234 = vmatprep.subr.mxu0 0.0
    %235 = vmatpush1.msra.mxu0 0.0
    %236 = vmatprep.subr.mxu0 0.0
    %237 = vmatpush1.msra.mxu0 0.0
    %238 = vmatprep.subr.mxu0 0.0
    %239 = vmatpush1.msra.mxu0 0.0
    %240 = vmatprep.subr.mxu0 0.0
    %241 = vmatpush1.msra.mxu0 0.0
    %242 = vmatprep.subr.mxu0 0.0
    %243 = vmatpush1.msra.mxu0 0.0
    %244 = vmatprep.subr.mxu0 0.0
    %245 = vmatpush1.msra.mxu0 %v132
    %246 = vmatprep.subr.mxu0 0.0
    %247 = vmatpush1.msra.mxu0 %v131
    %248 = vmatprep.subr.mxu0 0.0
    %249 = vmatpush2.msra.mxu0 0.0
    %250 = vmatprep.subr.mxu0 0.0
    %251 = vmatpush2.msra.mxu0 0.0
    %252 = vmatprep.subr.mxu0 0.0
    %253 = vmatpush2.msra.mxu0 0.0
    %254 = vmatprep.subr.mxu0 0.0
    %255 = vmatpush2.msra.mxu0 0.0
    %256 = vmatprep.subr.mxu0 0.0
    %257 = vmatpush2.msra.mxu0 0.0
    %258 = vmatprep.subr.mxu0 0.0
    %259 = vmatpush2.msra.mxu0 0.0
    %260 = vmatprep.subr.mxu0 0.0
    %261 = vmatpush2.msra.mxu0 0.0
    %262 = vmatprep.subr.mxu0 0.0
    %263 = vmatpush2.msra.mxu0 0.0
    %264 = vmatprep.subr.mxu0 0.0
    %265 = vmatpush2.msra.mxu0 0.0
    %266 = vmatprep.subr.mxu0 0.0
    %267 = vmatpush2.msra.mxu0 0.0
    %268 = vmatprep.subr.mxu0 0.0
    %269 = vmatpush2.msra.mxu0 0.0
    %270 = vmatprep.subr.mxu0 0.0
    %271 = vmatpush2.msra.mxu0 0.0
    %272 = vmatprep.subr.mxu0 0.0
    %273 = vmatpush2.msra.mxu0 0.0
    %274 = vmatprep.subr.mxu0 0.0
    %275 = vmatpush2.msra.mxu0 0.0
    %276 = vmatprep.subr.mxu0 0.0
    %277 = vmatpush2.msra.mxu0 0.0
    %278 = vmatprep.subr.mxu0 0.0
    %279 = vmatpush2.msra.mxu0 0.0
    %280 = vmatprep.mubr.f32.mxu0 0.0
    %281 = vmatmul.mubr.f32.gmra.mxu0 %v214
    %v282 = vpop.f32.mrf.mxu0
    %v283 = vadd.f32 %v209, %v282
    %v284 = vpop.f32.mrf.mxu0
    %285 = vdwg.mxu0
    %v286 = vld [vmem:[%s6] sm:$0x1f]
    %vm287 = vcmask 39936
    %v289 = vsel %vm287, %v129, 0
    %vm291 = vcmask 1044480
    %v293 = vsel %vm291, %v286, 0
    %295 = vmatprep.subr.mxu0 0.0
    %296 = vmatpush1.msra.mxu0 0.0
    %297 = vmatprep.subr.mxu0 0.0
    %298 = vmatpush1.msra.mxu0 0.0
    %299 = vmatprep.subr.mxu0 0.0
    %300 = vmatpush1.msra.mxu0 0.0
    %301 = vmatprep.subr.mxu0 0.0
    %302 = vmatpush1.msra.mxu0 0.0
    %303 = vmatprep.subr.mxu0 0.0
    %304 = vmatpush1.msra.mxu0 0.0
    %305 = vmatprep.subr.mxu0 0.0
    %306 = vmatpush1.msra.mxu0 0.0
    %307 = vmatprep.subr.mxu0 0.0
    %308 = vmatpush1.msra.mxu0 0.0
    %309 = vmatprep.subr.mxu0 0.0
    %310 = vmatpush1.msra.mxu0 0.0
    %311 = vmatprep.subr.mxu0 0.0
    %312 = vmatpush1.msra.mxu0 0.0
    %313 = vmatprep.subr.mxu0 0.0
    %314 = vmatpush1.msra.mxu0 0.0
    %315 = vmatprep.subr.mxu0 0.0
    %316 = vmatpush1.msra.mxu0 0.0
    %317 = vmatprep.subr.mxu0 0.0
    %318 = vmatpush1.msra.mxu0 0.0
    %319 = vmatprep.subr.mxu0 0.0
    %320 = vmatpush1.msra.mxu0 0.0
    %321 = vmatprep.subr.mxu0 0.0
    %322 = vmatpush1.msra.mxu0 0.0
    %323 = vmatprep.subr.mxu0 0.0
    %324 = vmatpush1.msra.mxu0 0.0
    %325 = vmatprep.subr.mxu0 0.0
    %326 = vmatpush1.msra.mxu0 %v293
    %327 = vmatprep.subr.mxu0 0.0
    %328 = vmatpush2.msra.mxu0 0.0
    %329 = vmatprep.subr.mxu0 0.0
    %330 = vmatpush2.msra.mxu0 0.0
    %331 = vmatprep.subr.mxu0 0.0
    %332 = vmatpush2.msra.mxu0 0.0
    %333 = vmatprep.subr.mxu0 0.0
    %334 = vmatpush2.msra.mxu0 0.0
    %335 = vmatprep.subr.mxu0 0.0
    %336 = vmatpush2.msra.mxu0 0.0
    %337 = vmatprep.subr.mxu0 0.0
    %338 = vmatpush2.msra.mxu0 0.0
    %339 = vmatprep.subr.mxu0 0.0
    %340 = vmatpush2.msra.mxu0 0.0
    %341 = vmatprep.subr.mxu0 0.0
    %342 = vmatpush2.msra.mxu0 0.0
    %343 = vmatprep.subr.mxu0 0.0
    %344 = vmatpush2.msra.mxu0 0.0
    %345 = vmatprep.subr.mxu0 0.0
    %346 = vmatpush2.msra.mxu0 0.0
    %347 = vmatprep.subr.mxu0 0.0
    %348 = vmatpush2.msra.mxu0 0.0
    %349 = vmatprep.subr.mxu0 0.0
    %350 = vmatpush2.msra.mxu0 0.0
    %351 = vmatprep.subr.mxu0 0.0
    %352 = vmatpush2.msra.mxu0 0.0
    %353 = vmatprep.subr.mxu0 0.0
    %354 = vmatpush2.msra.mxu0 0.0
    %355 = vmatprep.subr.mxu0 0.0
    %356 = vmatpush2.msra.mxu0 0.0
    %357 = vmatprep.subr.mxu0 0.0
    %358 = vmatpush2.msra.mxu0 0.0
    %359 = vmatprep.mubr.f32.mxu0 0.0
    %360 = vmatmul.mubr.f32.gmra.mxu0 %v289
    %v361 = vpop.f32.mrf.mxu0
    %v362 = vadd.f32 0.0, %v361
    %v363 = vpop.f32.mrf.mxu0
    %364 = vdwg.mxu0
    %v365 = vadd.f32 %v283, %v362
    %v366 = vld [vmem:[#allocation5] sm:$0x1]
    %v368 = vlaneseq
    %v369 = vshrl.u32 %v368, 7
    %v370 = vsub.s32 0, %v369
    %v371 = vrot.slane %v366, %v370
    %v373 = vadd.f32 %v365, %v371
    %v374 = vmax.f32 %v373, 0.0
    %v375 = vld [vmem:[%s8] sm:$0xff]
    %v376 = vld [vmem:[%s8 + $0x8] sm:$0xff]
    %v377 = vld [vmem:[%s8 + $0x10] sm:$0xff]
    %v378 = vld [vmem:[%s8 + $0x18] sm:$0xff]
    %v379 = vld [vmem:[#allocation7] sm:$0x1]
    %v381 = vlaneseq
    %v382 = vshrl.u32 %v381, 7
    %v383 = vsub.s32 0, %v382
    %v384 = vrot.slane %v379, %v383
    %vm386 = vcmask 261120
    %v388 = vsel %vm386, %v374, 0
    %390 = vmatprep.subr.mxu0 0.0
    %391 = vmatpush1.msra.mxu0 0.0
    %392 = vmatprep.subr.mxu0 0.0
    %393 = vmatpush1.msra.mxu0 0.0
    %394 = vmatprep.subr.mxu0 0.0
    %395 = vmatpush1.msra.mxu0 0.0
    %396 = vmatprep.subr.mxu0 0.0
    %397 = vmatpush1.msra.mxu0 0.0
    %398 = vmatprep.subr.mxu0 0.0
    %399 = vmatpush1.msra.mxu0 0.0
    %400 = vmatprep.subr.mxu0 0.0
    %401 = vmatpush1.msra.mxu0 0.0
    %402 = vmatprep.subr.mxu0 0.0
    %403 = vmatpush1.msra.mxu0 0.0
    %404 = vmatprep.subr.mxu0 0.0
    %405 = vmatpush1.msra.mxu0 0.0
    %406 = vmatprep.subr.mxu0 0.0
    %407 = vmatpush1.msra.mxu0 0.0
    %408 = vmatprep.subr.mxu0 0.0
    %409 = vmatpush1.msra.mxu0 0.0
    %410 = vmatprep.subr.mxu0 0.0
    %411 = vmatpush1.msra.mxu0 0.0
    %412 = vmatprep.subr.mxu0 0.0
    %413 = vmatpush1.msra.mxu0 0.0
    %414 = vmatprep.subr.mxu0 0.0
    %415 = vmatpush1.msra.mxu0 %v378
    %416 = vmatprep.subr.mxu0 0.0
    %417 = vmatpush1.msra.mxu0 %v377
    %418 = vmatprep.subr.mxu0 0.0
    %419 = vmatpush1.msra.mxu0 %v376
    %420 = vmatprep.subr.mxu0 0.0
    %421 = vmatpush1.msra.mxu0 %v375
    %422 = vmatprep.subr.mxu0 0.0
    %423 = vmatpush2.msra.mxu0 0.0
    %424 = vmatprep.subr.mxu0 0.0
    %425 = vmatpush2.msra.mxu0 0.0
    %426 = vmatprep.subr.mxu0 0.0
    %427 = vmatpush2.msra.mxu0 0.0
    %428 = vmatprep.subr.mxu0 0.0
    %429 = vmatpush2.msra.mxu0 0.0
    %430 = vmatprep.subr.mxu0 0.0
    %431 = vmatpush2.msra.mxu0 0.0
    %432 = vmatprep.subr.mxu0 0.0
    %433 = vmatpush2.msra.mxu0 0.0
    %434 = vmatprep.subr.mxu0 0.0
    %435 = vmatpush2.msra.mxu0 0.0
    %436 = vmatprep.subr.mxu0 0.0
    %437 = vmatpush2.msra.mxu0 0.0
    %438 = vmatprep.subr.mxu0 0.0
    %439 = vmatpush2.msra.mxu0 0.0
    %440 = vmatprep.subr.mxu0 0.0
    %441 = vmatpush2.msra.mxu0 0.0
    %442 = vmatprep.subr.mxu0 0.0
    %443 = vmatpush2.msra.mxu0 0.0
    %444 = vmatprep.subr.mxu0 0.0
    %445 = vmatpush2.msra.mxu0 0.0
    %446 = vmatprep.subr.mxu0 0.0
    %447 = vmatpush2.msra.mxu0 0.0
    %448 = vmatprep.subr.mxu0 0.0
    %449 = vmatpush2.msra.mxu0 0.0
    %450 = vmatprep.subr.mxu0 0.0
    %451 = vmatpush2.msra.mxu0 0.0
    %452 = vmatprep.subr.mxu0 0.0
    %453 = vmatpush2.msra.mxu0 0.0
    %454 = vmatprep.mubr.f32.mxu0 0.0
    %455 = vmatmul.mubr.f32.gmra.mxu0 %v388
    %v456 = vpop.f32.mrf.mxu0
    %v457 = vadd.f32 %v384, %v456
    %v458 = vpop.f32.mrf.mxu0
    %459 = vdwg.mxu0
    %v460 = vmax.f32 %v457, 0.0
    %v461 = vld [vmem:[%s10] sm:$0xff]
    %v462 = vld [vmem:[%s10 + $0x8] sm:$0xff]
    %v463 = vld [vmem:[#allocation8] sm:$0x1]
    %v465 = vlaneseq
    %v466 = vshrl.u32 %v465, 7
    %v467 = vsub.s32 0, %v466
    %v468 = vrot.slane %v463, %v467
    %v471 = vsel %vm212, %v460, 0
    %473 = vmatprep.subr.mxu0 0.0
    %474 = vmatpush1.msra.mxu0 0.0
    %475 = vmatprep.subr.mxu0 0.0
    %476 = vmatpush1.msra.mxu0 0.0
    %477 = vmatprep.subr.mxu0 0.0
    %478 = vmatpush1.msra.mxu0 0.0
    %479 = vmatprep.subr.mxu0 0.0
    %480 = vmatpush1.msra.mxu0 0.0
    %481 = vmatprep.subr.mxu0 0.0
    %482 = vmatpush1.msra.mxu0 0.0
    %483 = vmatprep.subr.mxu0 0.0
    %484 = vmatpush1.msra.mxu0 0.0
    %485 = vmatprep.subr.mxu0 0.0
    %486 = vmatpush1.msra.mxu0 0.0
    %487 = vmatprep.subr.mxu0 0.0
    %488 = vmatpush1.msra.mxu0 0.0
    %489 = vmatprep.subr.mxu0 0.0
    %490 = vmatpush1.msra.mxu0 0.0
    %491 = vmatprep.subr.mxu0 0.0
    %492 = vmatpush1.msra.mxu0 0.0
    %493 = vmatprep.subr.mxu0 0.0
    %494 = vmatpush1.msra.mxu0 0.0
    %495 = vmatprep.subr.mxu0 0.0
    %496 = vmatpush1.msra.mxu0 0.0
    %497 = vmatprep.subr.mxu0 0.0
    %498 = vmatpush1.msra.mxu0 0.0
    %499 = vmatprep.subr.mxu0 0.0
    %500 = vmatpush1.msra.mxu0 0.0
    %501 = vmatprep.subr.mxu0 0.0
    %502 = vmatpush1.msra.mxu0 %v462
    %503 = vmatprep.subr.mxu0 0.0
    %504 = vmatpush1.msra.mxu0 %v461
    %505 = vmatprep.subr.mxu0 0.0
    %506 = vmatpush2.msra.mxu0 0.0
    %507 = vmatprep.subr.mxu0 0.0
    %508 = vmatpush2.msra.mxu0 0.0
    %509 = vmatprep.subr.mxu0 0.0
    %510 = vmatpush2.msra.mxu0 0.0
    %511 = vmatprep.subr.mxu0 0.0
    %512 = vmatpush2.msra.mxu0 0.0
    %513 = vmatprep.subr.mxu0 0.0
    %514 = vmatpush2.msra.mxu0 0.0
    %515 = vmatprep.subr.mxu0 0.0
    %516 = vmatpush2.msra.mxu0 0.0
    %517 = vmatprep.subr.mxu0 0.0
    %518 = vmatpush2.msra.mxu0 0.0
    %519 = vmatprep.subr.mxu0 0.0
    %520 = vmatpush2.msra.mxu0 0.0
    %521 = vmatprep.subr.mxu0 0.0
    %522 = vmatpush2.msra.mxu0 0.0
    %523 = vmatprep.subr.mxu0 0.0
    %524 = vmatpush2.msra.mxu0 0.0
    %525 = vmatprep.subr.mxu0 0.0
    %526 = vmatpush2.msra.mxu0 0.0
    %527 = vmatprep.subr.mxu0 0.0
    %528 = vmatpush2.msra.mxu0 0.0
    %529 = vmatprep.subr.mxu0 0.0
    %530 = vmatpush2.msra.mxu0 0.0
    %531 = vmatprep.subr.mxu0 0.0
    %532 = vmatpush2.msra.mxu0 0.0
    %533 = vmatprep.subr.mxu0 0.0
    %534 = vmatpush2.msra.mxu0 0.0
    %535 = vmatprep.subr.mxu0 0.0
    %536 = vmatpush2.msra.mxu0 0.0
    %537 = vmatprep.mubr.f32.mxu0 0.0
    %538 = vmatmul.mubr.f32.gmra.mxu0 %v471
    %v539 = vpop.f32.mrf.mxu0
    %v540 = vadd.f32 %v468, %v539
    %v541 = vpop.f32.mrf.mxu0
    %542 = vdwg.mxu0
    %v543 = vld [vmem:[%s3] sm:$0xff]
    %v544 = vmul.f32 %v540, 0.5
    %v545 = vmul.f32 %v544, 1.442695
    %v546 = vpow.pop %v545
    %548 = vrot.lane.b32.xlu0 %v546, 120
    %v549 = vpop.permute.xlu0 %548
    %v551 = vmul.f32 %v543, %v549
    %v552 = vadd.f32 %v551, %v540
    %v553 = vld [vmem:[%s12] sm:$0xff]
    %v554 = vld [vmem:[#allocation10] sm:$0x7]
    %v556 = vsel %vm138, %v554, 0
    %558 = vmatprep.subr.mxu0 0.0
    %559 = vmatpush1.msra.mxu0 0.0
    %560 = vmatprep.subr.mxu0 0.0
    %561 = vmatpush1.msra.mxu0 0.0
    %562 = vmatprep.subr.mxu0 0.0
    %563 = vmatpush1.msra.mxu0 0.0
    %564 = vmatprep.subr.mxu0 0.0
    %565 = vmatpush1.msra.mxu0 0.0
    %566 = vmatprep.subr.mxu0 0.0
    %567 = vmatpush1.msra.mxu0 0.0
    %568 = vmatprep.subr.mxu0 0.0
    %569 = vmatpush1.msra.mxu0 0.0
    %570 = vmatprep.subr.mxu0 0.0
    %571 = vmatpush1.msra.mxu0 0.0
    %572 = vmatprep.subr.mxu0 0.0
    %573 = vmatpush1.msra.mxu0 0.0
    %574 = vmatprep.subr.mxu0 0.0
    %575 = vmatpush1.msra.mxu0 0.0
    %576 = vmatprep.subr.mxu0 0.0
    %577 = vmatpush1.msra.mxu0 0.0
    %578 = vmatprep.subr.mxu0 0.0
    %579 = vmatpush1.msra.mxu0 0.0
    %580 = vmatprep.subr.mxu0 0.0
    %581 = vmatpush1.msra.mxu0 0.0
    %582 = vmatprep.subr.mxu0 0.0
    %583 = vmatpush1.msra.mxu0 0.0
    %584 = vmatprep.subr.mxu0 0.0
    %585 = vmatpush1.msra.mxu0 0.0
    %586 = vmatprep.subr.mxu0 0.0
    %587 = vmatpush1.msra.mxu0 0.0
    %588 = vmatprep.subr.mxu0 0.0
    %589 = vmatpush1.msra.mxu0 %v556
    %590 = vmatprep.subr.mxu0 0.0
    %591 = vmatpush2.msra.mxu0 0.0
    %592 = vmatprep.subr.mxu0 0.0
    %593 = vmatpush2.msra.mxu0 0.0
    %594 = vmatprep.subr.mxu0 0.0
    %595 = vmatpush2.msra.mxu0 0.0
    %596 = vmatprep.subr.mxu0 0.0
    %597 = vmatpush2.msra.mxu0 0.0
    %598 = vmatprep.subr.mxu0 0.0
    %599 = vmatpush2.msra.mxu0 0.0
    %600 = vmatprep.subr.mxu0 0.0
    %601 = vmatpush2.msra.mxu0 0.0
    %602 = vmatprep.subr.mxu0 0.0
    %603 = vmatpush2.msra.mxu0 0.0
    %604 = vmatprep.subr.mxu0 0.0
    %605 = vmatpush2.msra.mxu0 0.0
    %606 = vmatprep.subr.mxu0 0.0
    %607 = vmatpush2.msra.mxu0 0.0
    %608 = vmatprep.subr.mxu0 0.0
    %609 = vmatpush2.msra.mxu0 0.0
    %610 = vmatprep.subr.mxu0 0.0
    %611 = vmatpush2.msra.mxu0 0.0
    %612 = vmatprep.subr.mxu0 0.0
    %613 = vmatpush2.msra.mxu0 0.0
    %614 = vmatprep.subr.mxu0 0.0
    %615 = vmatpush2.msra.mxu0 0.0
    %616 = vmatprep.subr.mxu0 0.0
    %617 = vmatpush2.msra.mxu0 0.0
    %618 = vmatprep.subr.mxu0 0.0
    %619 = vmatpush2.msra.mxu0 0.0
    %620 = vmatprep.subr.mxu0 0.0
    %621 = vmatpush2.msra.mxu0 0.0
    %622 = vmatprep.mubr.f32.mxu0 0.0
    %623 = vmatmul.mubr.f32.gmra.mxu0 %v136
    %v624 = vpop.f32.mrf.mxu0
    %v625 = vadd.f32 0.0, %v624
    %v626 = vpop.f32.mrf.mxu0
    %627 = vdwg.mxu0
    %vm628 = vcmask 64512
    %v630 = vsel %vm628, %v552, 0
    %632 = vmatprep.subr.mxu0 0.0
    %633 = vmatpush1.msra.mxu0 0.0
    %634 = vmatprep.subr.mxu0 0.0
    %635 = vmatpush1.msra.mxu0 0.0
    %636 = vmatprep.subr.mxu0 0.0
    %637 = vmatpush1.msra.mxu0 0.0
    %638 = vmatprep.subr.mxu0 0.0
    %639 = vmatpush1.msra.mxu0 0.0
    %640 = vmatprep.subr.mxu0 0.0
    %641 = vmatpush1.msra.mxu0 0.0
    %642 = vmatprep.subr.mxu0 0.0
    %643 = vmatpush1.msra.mxu0 0.0
    %644 = vmatprep.subr.mxu0 0.0
    %645 = vmatpush1.msra.mxu0 0.0
    %646 = vmatprep.subr.mxu0 0.0
    %647 = vmatpush1.msra.mxu0 0.0
    %648 = vmatprep.subr.mxu0 0.0
    %649 = vmatpush1.msra.mxu0 0.0
    %650 = vmatprep.subr.mxu0 0.0
    %651 = vmatpush1.msra.mxu0 0.0
    %652 = vmatprep.subr.mxu0 0.0
    %653 = vmatpush1.msra.mxu0 0.0
    %654 = vmatprep.subr.mxu0 0.0
    %655 = vmatpush1.msra.mxu0 0.0
    %656 = vmatprep.subr.mxu0 0.0
    %657 = vmatpush1.msra.mxu0 0.0
    %658 = vmatprep.subr.mxu0 0.0
    %659 = vmatpush1.msra.mxu0 0.0
    %660 = vmatprep.subr.mxu0 0.0
    %661 = vmatpush1.msra.mxu0 0.0
    %662 = vmatprep.subr.mxu0 0.0
    %663 = vmatpush1.msra.mxu0 %v553
    %664 = vmatprep.subr.mxu0 0.0
    %665 = vmatpush2.msra.mxu0 0.0
    %666 = vmatprep.subr.mxu0 0.0
    %667 = vmatpush2.msra.mxu0 0.0
    %668 = vmatprep.subr.mxu0 0.0
    %669 = vmatpush2.msra.mxu0 0.0
    %670 = vmatprep.subr.mxu0 0.0
    %671 = vmatpush2.msra.mxu0 0.0
    %672 = vmatprep.subr.mxu0 0.0
    %673 = vmatpush2.msra.mxu0 0.0
    %674 = vmatprep.subr.mxu0 0.0
    %675 = vmatpush2.msra.mxu0 0.0
    %676 = vmatprep.subr.mxu0 0.0
    %677 = vmatpush2.msra.mxu0 0.0
    %678 = vmatprep.subr.mxu0 0.0
    %679 = vmatpush2.msra.mxu0 0.0
    %680 = vmatprep.subr.mxu0 0.0
    %681 = vmatpush2.msra.mxu0 0.0
    %682 = vmatprep.subr.mxu0 0.0
    %683 = vmatpush2.msra.mxu0 0.0
    %684 = vmatprep.subr.mxu0 0.0
    %685 = vmatpush2.msra.mxu0 0.0
    %686 = vmatprep.subr.mxu0 0.0
    %687 = vmatpush2.msra.mxu0 0.0
    %688 = vmatprep.subr.mxu0 0.0
    %689 = vmatpush2.msra.mxu0 0.0
    %690 = vmatprep.subr.mxu0 0.0
    %691 = vmatpush2.msra.mxu0 0.0
    %692 = vmatprep.subr.mxu0 0.0
    %693 = vmatpush2.msra.mxu0 0.0
    %694 = vmatprep.subr.mxu0 0.0
    %695 = vmatpush2.msra.mxu0 0.0
    %696 = vmatprep.mubr.f32.mxu0 0.0
    %697 = vmatmul.mubr.f32.gmra.mxu0 %v630
    %v698 = vpop.f32.mrf.mxu0
    %v699 = vadd.f32 %v625, %v698
    %v700 = vpop.f32.mrf.mxu0
    %701 = vdwg.mxu0
    %v702 = vld [vmem:[%s14] sm:$0x1f]
    %v704 = vsel %vm291, %v702, 0
    %706 = vmatprep.subr.mxu0 0.0
    %707 = vmatpush1.msra.mxu0 0.0
    %708 = vmatprep.subr.mxu0 0.0
    %709 = vmatpush1.msra.mxu0 0.0
    %710 = vmatprep.subr.mxu0 0.0
    %711 = vmatpush1.msra.mxu0 0.0
    %712 = vmatprep.subr.mxu0 0.0
    %713 = vmatpush1.msra.mxu0 0.0
    %714 = vmatprep.subr.mxu0 0.0
    %715 = vmatpush1.msra.mxu0 0.0
    %716 = vmatprep.subr.mxu0 0.0
    %717 = vmatpush1.msra.mxu0 0.0
    %718 = vmatprep.subr.mxu0 0.0
    %719 = vmatpush1.msra.mxu0 0.0
    %720 = vmatprep.subr.mxu0 0.0
    %721 = vmatpush1.msra.mxu0 0.0
    %722 = vmatprep.subr.mxu0 0.0
    %723 = vmatpush1.msra.mxu0 0.0
    %724 = vmatprep.subr.mxu0 0.0
    %725 = vmatpush1.msra.mxu0 0.0
    %726 = vmatprep.subr.mxu0 0.0
    %727 = vmatpush1.msra.mxu0 0.0
    %728 = vmatprep.subr.mxu0 0.0
    %729 = vmatpush1.msra.mxu0 0.0
    %730 = vmatprep.subr.mxu0 0.0
    %731 = vmatpush1.msra.mxu0 0.0
    %732 = vmatprep.subr.mxu0 0.0
    %733 = vmatpush1.msra.mxu0 0.0
    %734 = vmatprep.subr.mxu0 0.0
    %735 = vmatpush1.msra.mxu0 0.0
    %736 = vmatprep.subr.mxu0 0.0
    %737 = vmatpush1.msra.mxu0 %v704
    %738 = vmatprep.subr.mxu0 0.0
    %739 = vmatpush2.msra.mxu0 0.0
    %740 = vmatprep.subr.mxu0 0.0
    %741 = vmatpush2.msra.mxu0 0.0
    %742 = vmatprep.subr.mxu0 0.0
    %743 = vmatpush2.msra.mxu0 0.0
    %744 = vmatprep.subr.mxu0 0.0
    %745 = vmatpush2.msra.mxu0 0.0
    %746 = vmatprep.subr.mxu0 0.0
    %747 = vmatpush2.msra.mxu0 0.0
    %748 = vmatprep.subr.mxu0 0.0
    %749 = vmatpush2.msra.mxu0 0.0
    %750 = vmatprep.subr.mxu0 0.0
    %751 = vmatpush2.msra.mxu0 0.0
    %752 = vmatprep.subr.mxu0 0.0
    %753 = vmatpush2.msra.mxu0 0.0
    %754 = vmatprep.subr.mxu0 0.0
    %755 = vmatpush2.msra.mxu0 0.0
    %756 = vmatprep.subr.mxu0 0.0
    %757 = vmatpush2.msra.mxu0 0.0
    %758 = vmatprep.subr.mxu0 0.0
    %759 = vmatpush2.msra.mxu0 0.0
    %760 = vmatprep.subr.mxu0 0.0
    %761 = vmatpush2.msra.mxu0 0.0
    %762 = vmatprep.subr.mxu0 0.0
    %763 = vmatpush2.msra.mxu0 0.0
    %764 = vmatprep.subr.mxu0 0.0
    %765 = vmatpush2.msra.mxu0 0.0
    %766 = vmatprep.subr.mxu0 0.0
    %767 = vmatpush2.msra.mxu0 0.0
    %768 = vmatprep.subr.mxu0 0.0
    %769 = vmatpush2.msra.mxu0 0.0
    %770 = vmatprep.mubr.f32.mxu0 0.0
    %771 = vmatmul.mubr.f32.gmra.mxu0 %v289
    %v772 = vpop.f32.mrf.mxu0
    %v773 = vadd.f32 0.0, %v772
    %v774 = vpop.f32.mrf.mxu0
    %775 = vdwg.mxu0
    %v776 = vadd.f32 %v699, %v773
    %v777 = vld [vmem:[%s15] sm:$0x1]
    %v779 = vlaneseq
    %v780 = vshrl.u32 %v779, 7
    %v781 = vsub.s32 0, %v780
    %v782 = vrot.slane %v777, %v781
    %v784 = vadd.f32 %v776, %v782
    %v785 = vmax.f32 %v784, 0.0
    %v786 = vld [vmem:[%s16] sm:$0xff]
    %v787 = vld [vmem:[%s16 + $0x8] sm:$0xff]
    %v788 = vld [vmem:[%s17] sm:$0x1]
    %v790 = vlaneseq
    %v791 = vshrl.u32 %v790, 7
    %v792 = vsub.s32 0, %v791
    %v793 = vrot.slane %v788, %v792
    %v796 = vsel %vm212, %v785, 0
    %798 = vmatprep.subr.mxu0 0.0
    %799 = vmatpush1.msra.mxu0 0.0
    %800 = vmatprep.subr.mxu0 0.0
    %801 = vmatpush1.msra.mxu0 0.0
    %802 = vmatprep.subr.mxu0 0.0
    %803 = vmatpush1.msra.mxu0 0.0
    %804 = vmatprep.subr.mxu0 0.0
    %805 = vmatpush1.msra.mxu0 0.0
    %806 = vmatprep.subr.mxu0 0.0
    %807 = vmatpush1.msra.mxu0 0.0
    %808 = vmatprep.subr.mxu0 0.0
    %809 = vmatpush1.msra.mxu0 0.0
    %810 = vmatprep.subr.mxu0 0.0
    %811 = vmatpush1.msra.mxu0 0.0
    %812 = vmatprep.subr.mxu0 0.0
    %813 = vmatpush1.msra.mxu0 0.0
    %814 = vmatprep.subr.mxu0 0.0
    %815 = vmatpush1.msra.mxu0 0.0
    %816 = vmatprep.subr.mxu0 0.0
    %817 = vmatpush1.msra.mxu0 0.0
    %818 = vmatprep.subr.mxu0 0.0
    %819 = vmatpush1.msra.mxu0 0.0
    %820 = vmatprep.subr.mxu0 0.0
    %821 = vmatpush1.msra.mxu0 0.0
    %822 = vmatprep.subr.mxu0 0.0
    %823 = vmatpush1.msra.mxu0 0.0
    %824 = vmatprep.subr.mxu0 0.0
    %825 = vmatpush1.msra.mxu0 0.0
    %826 = vmatprep.subr.mxu0 0.0
    %827 = vmatpush1.msra.mxu0 %v787
    %828 = vmatprep.subr.mxu0 0.0
    %829 = vmatpush1.msra.mxu0 %v786
    %830 = vmatprep.subr.mxu0 0.0
    %831 = vmatpush2.msra.mxu0 0.0
    %832 = vmatprep.subr.mxu0 0.0
    %833 = vmatpush2.msra.mxu0 0.0
    %834 = vmatprep.subr.mxu0 0.0
    %835 = vmatpush2.msra.mxu0 0.0
    %836 = vmatprep.subr.mxu0 0.0
    %837 = vmatpush2.msra.mxu0 0.0
    %838 = vmatprep.subr.mxu0 0.0
    %839 = vmatpush2.msra.mxu0 0.0
    %840 = vmatprep.subr.mxu0 0.0
    %841 = vmatpush2.msra.mxu0 0.0
    %842 = vmatprep.subr.mxu0 0.0
    %843 = vmatpush2.msra.mxu0 0.0
    %844 = vmatprep.subr.mxu0 0.0
    %845 = vmatpush2.msra.mxu0 0.0
    %846 = vmatprep.subr.mxu0 0.0
    %847 = vmatpush2.msra.mxu0 0.0
    %848 = vmatprep.subr.mxu0 0.0
    %849 = vmatpush2.msra.mxu0 0.0
    %850 = vmatprep.subr.mxu0 0.0
    %851 = vmatpush2.msra.mxu0 0.0
    %852 = vmatprep.subr.mxu0 0.0
    %853 = vmatpush2.msra.mxu0 0.0
    %854 = vmatprep.subr.mxu0 0.0
    %855 = vmatpush2.msra.mxu0 0.0
    %856 = vmatprep.subr.mxu0 0.0
    %857 = vmatpush2.msra.mxu0 0.0
    %858 = vmatprep.subr.mxu0 0.0
    %859 = vmatpush2.msra.mxu0 0.0
    %860 = vmatprep.subr.mxu0 0.0
    %861 = vmatpush2.msra.mxu0 0.0
    %862 = vmatprep.mubr.f32.mxu0 0.0
    %863 = vmatmul.mubr.f32.gmra.mxu0 %v796
    %v864 = vpop.f32.mrf.mxu0
    %v865 = vadd.f32 %v793, %v864
    %v866 = vpop.f32.mrf.mxu0
    %867 = vdwg.mxu0
    %v868 = vmax.f32 %v865, 0.0
    %v869 = vld [vmem:[%s18] sm:$0xff]
    %v870 = vld [vmem:[%s18 + $0x8] sm:$0xff]
    %v871 = vld [vmem:[%s18 + $0x10] sm:$0xff]
    %v872 = vld [vmem:[%s18 + $0x18] sm:$0xff]
    %v873 = vld [vmem:[%s19] sm:$0x1]
    %v875 = vlaneseq
    %v876 = vshrl.u32 %v875, 7
    %v877 = vsub.s32 0, %v876
    %v878 = vrot.slane %v873, %v877
    %v881 = vsel %vm386, %v868, 0
    %883 = vmatprep.subr.mxu0 0.0
    %884 = vmatpush1.msra.mxu0 0.0
    %885 = vmatprep.subr.mxu0 0.0
    %886 = vmatpush1.msra.mxu0 0.0
    %887 = vmatprep.subr.mxu0 0.0
    %888 = vmatpush1.msra.mxu0 0.0
    %889 = vmatprep.subr.mxu0 0.0
    %890 = vmatpush1.msra.mxu0 0.0
    %891 = vmatprep.subr.mxu0 0.0
    %892 = vmatpush1.msra.mxu0 0.0
    %893 = vmatprep.subr.mxu0 0.0
    %894 = vmatpush1.msra.mxu0 0.0
    %895 = vmatprep.subr.mxu0 0.0
    %896 = vmatpush1.msra.mxu0 0.0
    %897 = vmatprep.subr.mxu0 0.0
    %898 = vmatpush1.msra.mxu0 0.0
    %899 = vmatprep.subr.mxu0 0.0
    %900 = vmatpush1.msra.mxu0 0.0
    %901 = vmatprep.subr.mxu0 0.0
    %902 = vmatpush1.msra.mxu0 0.0
    %903 = vmatprep.subr.mxu0 0.0
    %904 = vmatpush1.msra.mxu0 0.0
    %905 = vmatprep.subr.mxu0 0.0
    %906 = vmatpush1.msra.mxu0 0.0
    %907 = vmatprep.subr.mxu0 0.0
    %908 = vmatpush1.msra.mxu0 %v872
    %909 = vmatprep.subr.mxu0 0.0
    %910 = vmatpush1.msra.mxu0 %v871
    %911 = vmatprep.subr.mxu0 0.0
    %912 = vmatpush1.msra.mxu0 %v870
    %913 = vmatprep.subr.mxu0 0.0
    %914 = vmatpush1.msra.mxu0 %v869
    %915 = vmatprep.subr.mxu0 0.0
    %916 = vmatpush2.msra.mxu0 0.0
    %917 = vmatprep.subr.mxu0 0.0
    %918 = vmatpush2.msra.mxu0 0.0
    %919 = vmatprep.subr.mxu0 0.0
    %920 = vmatpush2.msra.mxu0 0.0
    %921 = vmatprep.subr.mxu0 0.0
    %922 = vmatpush2.msra.mxu0 0.0
    %923 = vmatprep.subr.mxu0 0.0
    %924 = vmatpush2.msra.mxu0 0.0
    %925 = vmatprep.subr.mxu0 0.0
    %926 = vmatpush2.msra.mxu0 0.0
    %927 = vmatprep.subr.mxu0 0.0
    %928 = vmatpush2.msra.mxu0 0.0
    %929 = vmatprep.subr.mxu0 0.0
    %930 = vmatpush2.msra.mxu0 0.0
    %931 = vmatprep.subr.mxu0 0.0
    %932 = vmatpush2.msra.mxu0 0.0
    %933 = vmatprep.subr.mxu0 0.0
    %934 = vmatpush2.msra.mxu0 0.0
    %935 = vmatprep.subr.mxu0 0.0
    %936 = vmatpush2.msra.mxu0 0.0
    %937 = vmatprep.subr.mxu0 0.0
    %938 = vmatpush2.msra.mxu0 0.0
    %939 = vmatprep.subr.mxu0 0.0
    %940 = vmatpush2.msra.mxu0 0.0
    %941 = vmatprep.subr.mxu0 0.0
    %942 = vmatpush2.msra.mxu0 0.0
    %943 = vmatprep.subr.mxu0 0.0
    %944 = vmatpush2.msra.mxu0 0.0
    %945 = vmatprep.subr.mxu0 0.0
    %946 = vmatpush2.msra.mxu0 0.0
    %947 = vmatprep.mubr.f32.mxu0 0.0
    %948 = vmatmul.mubr.f32.gmra.mxu0 %v881
    %v949 = vpop.f32.mrf.mxu0
    %v950 = vadd.f32 %v878, %v949
    %v951 = vpop.f32.mrf.mxu0
    %952 = vdwg.mxu0
    %953 = vst.msk [vmem:[#allocation11] sm:$0xff] %vm212, %v950
    %954 = vst.msk [vmem:[#allocation12] sm:$0xff] %vm628, %v540
    %956 = vrot.lane.b32.xlu0 %v540, 120
    %v957 = vpop.permute.xlu0 %956
    %959 = vst.msk [vmem:[#allocation14] sm:$0xff] %vm628, %v957
    // Predicated region
    $region102: #{tpu_custom_call.1} parent=1 // pred_check
      _
    $region103: #{tpu_custom_call.1} parent=1 // pred_check_branch
      %961 = sbr.rel (0) target = $region105
    $region104: #{tpu_custom_call.1} parent=1 // pred_region
      %s963 = ssub.s32 128, 128
      %964 = vsyncadd [#allocation4], %s963
      %s966 = sshll.u32 [#allocation11], 4
      %s967 = int_to_ptr.vmem [resolvable:$true] %s966
      %969 = dma.vmem_to_hbm [thread:$0]  %s967, 128, %s20, [#allocation4]
    $region105: #{tpu_custom_call.1} parent=1 // pred_fallthru
      _
    // Predicated region
    $region106: #{tpu_custom_call.1} parent=1 // pred_check
      _
    $region107: #{tpu_custom_call.1} parent=1 // pred_check_branch
      %971 = sbr.rel (0) target = $region109
    $region108: #{tpu_custom_call.1} parent=1 // pred_region
      %s973 = ssub.s32 128, 128
      %974 = vsyncadd [#allocation13], %s973
      %s976 = sshll.u32 [#allocation12], 4
      %s977 = int_to_ptr.vmem [resolvable:$true] %s976
      %979 = dma.vmem_to_hbm [thread:$0]  %s977, 128, %s21, [#allocation13]
    $region109: #{tpu_custom_call.1} parent=1 // pred_fallthru
      _
    // Predicated region
    $region110: #{tpu_custom_call.1} parent=1 // pred_check
      _
    $region111: #{tpu_custom_call.1} parent=1 // pred_check_branch
      %981 = sbr.rel (0) target = $region113
    $region112: #{tpu_custom_call.1} parent=1 // pred_region
      %s983 = ssub.s32 128, 128
      %984 = vsyncadd [#allocation13], %s983
      %s986 = sshll.u32 [#allocation14], 4
      %s987 = int_to_ptr.vmem [resolvable:$true] %s986
      %989 = dma.vmem_to_hbm [thread:$0]  %s987, 128, %s22, [#allocation13]
    $region113: #{tpu_custom_call.1} parent=1 // pred_fallthru
      _
    // Predicated region
    $region114: #{tpu_custom_call.1} parent=1 // pred_check
      _
    $region115: #{tpu_custom_call.1} parent=1 // pred_check_branch
      %991 = sbr.rel (0) target = $region117
    $region116: #{tpu_custom_call.1} parent=1 // pred_region
      %992 = dma.done [#allocation4], 128
    $region117: #{tpu_custom_call.1} parent=1 // pred_fallthru
      _
    // Predicated region
    $region118: #{tpu_custom_call.1} parent=1 // pred_check
      _
    $region119: #{tpu_custom_call.1} parent=1 // pred_check_branch
      %994 = sbr.rel (0) target = $region121
    $region120: #{tpu_custom_call.1} parent=1 // pred_region
      %995 = dma.done [#allocation13], 128
    $region121: #{tpu_custom_call.1} parent=1 // pred_fallthru
      _
    // Predicated region
    $region122: #{tpu_custom_call.1} parent=1 // pred_check
      _
    $region123: #{tpu_custom_call.1} parent=1 // pred_check_branch
      %997 = sbr.rel (0) target = $region125
    $region124: #{tpu_custom_call.1} parent=1 // pred_region
      %998 = dma.done [#allocation13], 128
    $region125: #{tpu_custom_call.1} parent=1 // pred_fallthru
      _
    %999 = vsyncpa [#allocation3], 1
    %1000 = vsyncpa [#allocation6], 1
    %1001 = vsyncpa [#allocation9], 1
    %1002 = vsyncpa [#allocation4], 1
    %1003 = vsyncpa [#allocation13], 1

</llo_original>
